<compile_context>
chip_gen: v5e
topology: v5e:2x2
jax: 0.10.0
libtpu: 0.0.40
codegen_flags: <defaults>
</compile_context>

<pallas_src>
import jax
import jax.numpy as jnp
from jax.experimental import pallas as pl
from jax.experimental.pallas import tpu as pltpu

NN = 50          # hidden width of the PyTorch model
HP = 64          # padded hidden width (>= NN; multiple of 8 f32 sublanes / 16 bf16 packing)
MAX_TB = 4096    # upper bound on the batch tile (lane axis), multiple of 128


def _mlp_kernel(x_ref,
                w1_ref, b1_ref,
                w2_ref, b2_ref,
                w3_ref, b3_ref,
                w4_ref, b4_ref,
                w5_ref, b5_ref,
                o_ref):
    """One batch tile: x (1, TB) -> out (1, TB); hidden activations are (HP, TB)."""
    cdt = w2_ref.dtype                                    # compute dtype (f32 or bf16)
    x = x_ref[...]                                        # (1, TB), f32

    # Layer 1: K=1 contraction -> VPU broadcast outer product (skip the MXU);
    # cast BEFORE tanh so all 4 tanh layers run in the compute dtype (bf16 EUP on v6e/v7x).
    h = jnp.tanh((w1_ref[...] * x + b1_ref[...]).astype(cdt))          # (HP, TB)

    # Layers 2-4: (HP, HP) @ (HP, TB) on the MXU, f32 accumulation, bias in the epilogue.
    for w_ref, b_ref in ((w2_ref, b2_ref), (w3_ref, b3_ref), (w4_ref, b4_ref)):
        acc = jnp.dot(w_ref[...], h, preferred_element_type=jnp.float32) + b_ref[...]
        h = jnp.tanh(acc.astype(cdt))                                   # (HP, TB)

    # Layer 5: (1, HP) @ (HP, TB) -> (1, TB); lane-dense store.
    out = jnp.dot(w5_ref[...], h, preferred_element_type=jnp.float32) + b5_ref[...]
    o_ref[...] = out.astype(o_ref.dtype)


def _device_kind():
    try:
        return jax.devices()[0].device_kind.lower()
    except Exception:
        return ""


def _pick_compute_dtype(kind=None):
    kind = _device_kind() if kind is None else kind
    # v6e / v7x expose bf16 on MXU, VPU and EUP -> ~2x matmul + tanh throughput.
    # Note: match "tpu7"/"7x" too -- v7x device_kind strings don't necessarily contain "v7".
    if any(tag in kind for tag in ("v6", "v7", "tpu7", "7x")):
        return jnp.bfloat16
    return jnp.float32            # v5e and older: no bf16 VALU/EUP, keep f32


def _is_v7(kind=None):
    kind = _device_kind() if kind is None else kind
    return any(tag in kind for tag in ("v7", "tpu7", "7x"))


def _auto_tile(B, max_tb=MAX_TB, min_tiles=2):
    """Largest lane-aligned (x128) batch tile <= max_tb that keeps >= min_tiles grid steps,
    without padding tiny batches up to a huge tile."""
    b128 = ((B + 127) // 128) * 128
    if b128 <= 256:
        return b128                                       # tiny batch: one small tile
    tb = max_tb
    while tb > 256 and (b128 + tb - 1) // tb < min_tiles:
        tb //= 2
    return tb


def net_forward(x, params, *, compute_dtype=None, tb=None):
    """x: (B, 1) float32.  params: list of (W, b) in PyTorch layout ((out, in), (out,))."""
    kind = _device_kind()
    if compute_dtype is None:
        compute_dtype = _pick_compute_dtype(kind)

    B = x.shape[0]
    tb = _auto_tile(B) if tb is None else tb
    num_tiles = pl.cdiv(B, tb)
    # v7x has 2 TensorCores: use CORE_PARALLEL on the batch axis with an even tile count.
    use_core_parallel = _is_v7(kind) and num_tiles >= 2
    if _is_v7(kind) and num_tiles > 1 and num_tiles % 2:
        num_tiles += 1
    Bp = num_tiles * tb

    # Batch on the lane axis, zero-padded to a multiple of the tile.
    xt = jnp.zeros((1, Bp), jnp.float32).at[0, :B].set(x[:, 0])

    (w1, b1), (w2, b2), (w3, b3), (w4, b4), (w5, b5) = params

    def pad_hidden_w(w):   # (NN, NN) -> (HP, HP); already (out, in) for W @ h
        return jnp.zeros((HP, HP), jnp.float32).at[:NN, :NN].set(w).astype(compute_dtype)

    def pad_col(v):        # (NN,) / (NN, 1) -> (HP, 1) f32 column (biases, first-layer column)
        return jnp.zeros((HP, 1), jnp.float32).at[:NN, 0].set(v.reshape(-1))

    w1p = pad_col(w1)                      # (HP, 1)  VPU layer, f32
    b1p = pad_col(b1)                      # (HP, 1)
    w2p, w3p, w4p = pad_hidden_w(w2), pad_hidden_w(w3), pad_hidden_w(w4)
    b2p, b3p, b4p = pad_col(b2), pad_col(b3), pad_col(b4)
    w5p = (jnp.zeros((1, HP), jnp.float32).at[0, :NN].set(w5.reshape(-1))
           .astype(compute_dtype))          # (1, HP)
    b5p = b5.reshape(1, 1).astype(jnp.float32)

    args = (xt, w1p, b1p, w2p, b2p, w3p, b3p, w4p, b4p, w5p, b5p)

    def build(weight_mode, dim_sem):
        # Weights/biases are grid-invariant: constant index_map keeps them resident in VMEM;
        # weight_mode=pl.Buffered(1) drops their (useless) second pipeline buffer.
        const = lambda shape: pl.BlockSpec(shape, lambda i: (0, 0), pipeline_mode=weight_mode)
        grid_spec = pltpu.PrefetchScalarGridSpec(
            num_scalar_prefetch=0,
            grid=(num_tiles,),
            in_specs=[
                pl.BlockSpec((1, tb), lambda i: (0, i)),   # x tile (batch on lanes)
                const((HP, 1)), const((HP, 1)),            # w1, b1
                const((HP, HP)), const((HP, 1)),           # w2, b2
                const((HP, HP)), const((HP, 1)),           # w3, b3
                const((HP, HP)), const((HP, 1)),           # w4, b4
                const((1, HP)), const((1, 1)),             # w5, b5
            ],
            out_specs=pl.BlockSpec((1, tb), lambda i: (0, i)),
        )
        return pl.pallas_call(
            _mlp_kernel,
            out_shape=jax.ShapeDtypeStruct((1, Bp), jnp.float32),
            grid_spec=grid_spec,
            compiler_params=pltpu.CompilerParams(dimension_semantics=dim_sem),
        )

    dim_sem = (pltpu.CORE_PARALLEL,) if use_core_parallel else ("parallel",)
    try:
        out = build(pl.Buffered(1), dim_sem)(*args)
    except Exception:
        # Conservative fallback (older jax / unsupported semantics): double-buffered weights,
        # plain "parallel" batch axis.  Same numerics, slightly more VMEM.
        out = build(None, ("parallel",))(*args)

    return out[0, :B].reshape(B, 1)


def init_params(key):
    """Deterministic init mimicking PyTorch nn.Linear default (U[-1/sqrt(fan_in), 1/sqrt(fan_in)]),
    stored in PyTorch layout: W (out_features, in_features), b (out_features,)."""
    sizes = [(1, NN), (NN, NN), (NN, NN), (NN, NN), (NN, 1)]
    params = []
    for fan_in, fan_out in sizes:
        key, kw, kb = jax.random.split(key, 3)
        bound = float(fan_in) ** -0.5
        w = jax.random.uniform(kw, (fan_out, fan_in), jnp.float32, -bound, bound)
        b = jax.random.uniform(kb, (fan_out,), jnp.float32, -bound, bound)
        params.append((w, b))
    return params


def reference_forward(x, params):
    h = x
    for i, (w, b) in enumerate(params):
        h = h @ w.T + b
        if i < len(params) - 1:
            h = jnp.tanh(h)
    return h


if __name__ == "__main__":
    key = jax.random.PRNGKey(0)
    key, kx = jax.random.split(key)

    params = init_params(key)
    compute_dtype = _pick_compute_dtype()
    tol = 1e-5 if compute_dtype == jnp.float32 else 5e-2

    # Small single-tile batch (collocation points t for the Van der Pol PINN).
    B = 8
    x = jax.random.uniform(kx, (B, 1), jnp.float32, -2.0, 2.0)
    out = jax.block_until_ready(net_forward(x, params, compute_dtype=compute_dtype))
    ref = reference_forward(x, params)
    assert out.shape == (B, 1)
    assert jnp.allclose(out, ref, atol=tol, rtol=tol), float(jnp.max(jnp.abs(out - ref)))

    # Multi-tile batch to exercise the grid / padding path.
    key, kx2 = jax.random.split(key)
    B2 = 300
    x2 = jax.random.uniform(kx2, (B2, 1), jnp.float32, -2.0, 2.0)
    out2 = jax.block_until_ready(net_forward(x2, params, compute_dtype=compute_dtype))
    ref2 = reference_forward(x2, params)
    assert out2.shape == (B2, 1)
    assert jnp.allclose(out2, ref2, atol=tol, rtol=tol), float(jnp.max(jnp.abs(out2 - ref2)))

    print("KERNEL_OK")
</pallas_src>

<mosaic_0001>
module attributes {stable_mosaic.version = 11 : i64} {
  func.func @_mlp_kernel(%arg0: i32, %arg1: memref<1x128xf32, #tpu.memory_space<vmem>>, %arg2: memref<64x1xf32, #tpu.memory_space<vmem>>, %arg3: memref<64x1xf32, #tpu.memory_space<vmem>>, %arg4: memref<64x64xf32, #tpu.memory_space<vmem>>, %arg5: memref<64x1xf32, #tpu.memory_space<vmem>>, %arg6: memref<64x64xf32, #tpu.memory_space<vmem>>, %arg7: memref<64x1xf32, #tpu.memory_space<vmem>>, %arg8: memref<64x64xf32, #tpu.memory_space<vmem>>, %arg9: memref<64x1xf32, #tpu.memory_space<vmem>>, %arg10: memref<1x64xf32, #tpu.memory_space<vmem>>, %arg11: memref<1x1xf32, #tpu.memory_space<vmem>>, %arg12: memref<1x128xf32, #tpu.memory_space<vmem>>) attributes {dimension_semantics = [#tpu.dimension_semantics<parallel>], iteration_bounds = array<i64: 1>, scalar_prefetch = 0 : i64, scratch_operands = 0 : i64, tpu.core_type = #tpu.core_type<tc>, window_params = [{transform_indices = @transform_0, window_bounds = array<i64: 1, 128>}, {pipeline_mode = #tpu.pipeline_mode<synchronous>, transform_indices = @transform_1, window_bounds = array<i64: 64, 1>}, {pipeline_mode = #tpu.pipeline_mode<synchronous>, transform_indices = @transform_2, window_bounds = array<i64: 64, 1>}, {pipeline_mode = #tpu.pipeline_mode<synchronous>, transform_indices = @transform_3, window_bounds = array<i64: 64, 64>}, {pipeline_mode = #tpu.pipeline_mode<synchronous>, transform_indices = @transform_4, window_bounds = array<i64: 64, 1>}, {pipeline_mode = #tpu.pipeline_mode<synchronous>, transform_indices = @transform_5, window_bounds = array<i64: 64, 64>}, {pipeline_mode = #tpu.pipeline_mode<synchronous>, transform_indices = @transform_6, window_bounds = array<i64: 64, 1>}, {pipeline_mode = #tpu.pipeline_mode<synchronous>, transform_indices = @transform_7, window_bounds = array<i64: 64, 64>}, {pipeline_mode = #tpu.pipeline_mode<synchronous>, transform_indices = @transform_8, window_bounds = array<i64: 64, 1>}, {pipeline_mode = #tpu.pipeline_mode<synchronous>, transform_indices = @transform_9, window_bounds = array<i64: 1, 64>}, {pipeline_mode = #tpu.pipeline_mode<synchronous>, transform_indices = @transform_10, window_bounds = array<i64: 1, 1>}, {transform_indices = @transform_11, window_bounds = array<i64: 1, 128>}]} {
    %c0 = arith.constant 0 : index
    %c0_0 = arith.constant 0 : index
    %0 = vector.load %arg1[%c0, %c0_0] : memref<1x128xf32, #tpu.memory_space<vmem>>, vector<1x128xf32>
    %c0_1 = arith.constant 0 : index
    %c0_2 = arith.constant 0 : index
    %1 = vector.load %arg2[%c0_1, %c0_2] : memref<64x1xf32, #tpu.memory_space<vmem>>, vector<64x1xf32>
    %2 = vector.broadcast %1 : vector<64x1xf32> to vector<64x128xf32>
    %3 = vector.broadcast %0 : vector<1x128xf32> to vector<64x128xf32>
    %4 = arith.mulf %2, %3 : vector<64x128xf32>
    %c0_3 = arith.constant 0 : index
    %c0_4 = arith.constant 0 : index
    %5 = vector.load %arg3[%c0_3, %c0_4] : memref<64x1xf32, #tpu.memory_space<vmem>>, vector<64x1xf32>
    %6 = vector.broadcast %5 : vector<64x1xf32> to vector<64x128xf32>
    %7 = arith.addf %4, %6 : vector<64x128xf32>
    %8 = math.tanh %7 : vector<64x128xf32>
    %c0_5 = arith.constant 0 : index
    %c0_6 = arith.constant 0 : index
    %9 = vector.load %arg4[%c0_5, %c0_6] : memref<64x64xf32, #tpu.memory_space<vmem>>, vector<64x64xf32>
    %cst = arith.constant dense<0.000000e+00> : vector<64x128xf32>
    %10 = tpu.matmul %9, %8, %cst {dimension_numbers = #tpu.dot_dimension_numbers<[1], [0], [0], [1], [0, 0, 1, 1], [], []>} : vector<64x64xf32>, vector<64x128xf32>, vector<64x128xf32> -> vector<64x128xf32>
    %c0_7 = arith.constant 0 : index
    %c0_8 = arith.constant 0 : index
    %11 = vector.load %arg5[%c0_7, %c0_8] : memref<64x1xf32, #tpu.memory_space<vmem>>, vector<64x1xf32>
    %12 = vector.broadcast %11 : vector<64x1xf32> to vector<64x128xf32>
    %13 = arith.addf %10, %12 : vector<64x128xf32>
    %14 = math.tanh %13 : vector<64x128xf32>
    %c0_9 = arith.constant 0 : index
    %c0_10 = arith.constant 0 : index
    %15 = vector.load %arg6[%c0_9, %c0_10] : memref<64x64xf32, #tpu.memory_space<vmem>>, vector<64x64xf32>
    %cst_11 = arith.constant dense<0.000000e+00> : vector<64x128xf32>
    %16 = tpu.matmul %15, %14, %cst_11 {dimension_numbers = #tpu.dot_dimension_numbers<[1], [0], [0], [1], [0, 0, 1, 1], [], []>} : vector<64x64xf32>, vector<64x128xf32>, vector<64x128xf32> -> vector<64x128xf32>
    %c0_12 = arith.constant 0 : index
    %c0_13 = arith.constant 0 : index
    %17 = vector.load %arg7[%c0_12, %c0_13] : memref<64x1xf32, #tpu.memory_space<vmem>>, vector<64x1xf32>
    %18 = vector.broadcast %17 : vector<64x1xf32> to vector<64x128xf32>
    %19 = arith.addf %16, %18 : vector<64x128xf32>
    %20 = math.tanh %19 : vector<64x128xf32>
    %c0_14 = arith.constant 0 : index
    %c0_15 = arith.constant 0 : index
    %21 = vector.load %arg8[%c0_14, %c0_15] : memref<64x64xf32, #tpu.memory_space<vmem>>, vector<64x64xf32>
    %cst_16 = arith.constant dense<0.000000e+00> : vector<64x128xf32>
    %22 = tpu.matmul %21, %20, %cst_16 {dimension_numbers = #tpu.dot_dimension_numbers<[1], [0], [0], [1], [0, 0, 1, 1], [], []>} : vector<64x64xf32>, vector<64x128xf32>, vector<64x128xf32> -> vector<64x128xf32>
    %c0_17 = arith.constant 0 : index
    %c0_18 = arith.constant 0 : index
    %23 = vector.load %arg9[%c0_17, %c0_18] : memref<64x1xf32, #tpu.memory_space<vmem>>, vector<64x1xf32>
    %24 = vector.broadcast %23 : vector<64x1xf32> to vector<64x128xf32>
    %25 = arith.addf %22, %24 : vector<64x128xf32>
    %26 = math.tanh %25 : vector<64x128xf32>
    %c0_19 = arith.constant 0 : index
    %c0_20 = arith.constant 0 : index
    %27 = vector.load %arg10[%c0_19, %c0_20] : memref<1x64xf32, #tpu.memory_space<vmem>>, vector<1x64xf32>
    %cst_21 = arith.constant dense<0.000000e+00> : vector<1x128xf32>
    %28 = tpu.matmul %27, %26, %cst_21 {dimension_numbers = #tpu.dot_dimension_numbers<[1], [0], [0], [1], [0, 0, 1, 1], [], []>} : vector<1x64xf32>, vector<64x128xf32>, vector<1x128xf32> -> vector<1x128xf32>
    %c0_22 = arith.constant 0 : index
    %c0_23 = arith.constant 0 : index
    %29 = vector.load %arg11[%c0_22, %c0_23] : memref<1x1xf32, #tpu.memory_space<vmem>>, vector<1x1xf32>
    %30 = vector.broadcast %29 : vector<1x1xf32> to vector<1x128xf32>
    %31 = arith.addf %28, %30 : vector<1x128xf32>
    %c0_24 = arith.constant 0 : index
    %c0_25 = arith.constant 0 : index
    %32 = vector.load %arg12[%c0_24, %c0_25] : memref<1x128xf32, #tpu.memory_space<vmem>>, vector<1x128xf32>
    tpu.vector_store %arg12[%c0_24, %c0_25], %31 {strides = array<i32>} : memref<1x128xf32, #tpu.memory_space<vmem>>, vector<1x128xf32>,
    return
  }
  func.func @transform_0(%arg0: i32) -> (i32, i32) {
    %c0_i32 = arith.constant 0 : i32
    %c0_i32_0 = arith.constant 0 : i32
    return %c0_i32, %arg0 : i32, i32
  }
  func.func @transform_1(%arg0: i32) -> (i32, i32) {
    %c0_i32 = arith.constant 0 : i32
    %c0_i32_0 = arith.constant 0 : i32
    %c0_i32_1 = arith.constant 0 : i32
    return %c0_i32, %c0_i32_0 : i32, i32
  }
  func.func @transform_2(%arg0: i32) -> (i32, i32) {
    %c0_i32 = arith.constant 0 : i32
    %c0_i32_0 = arith.constant 0 : i32
    %c0_i32_1 = arith.constant 0 : i32
    return %c0_i32, %c0_i32_0 : i32, i32
  }
  func.func @transform_3(%arg0: i32) -> (i32, i32) {
    %c0_i32 = arith.constant 0 : i32
    %c0_i32_0 = arith.constant 0 : i32
    %c0_i32_1 = arith.constant 0 : i32
    return %c0_i32, %c0_i32_0 : i32, i32
  }
  func.func @transform_4(%arg0: i32) -> (i32, i32) {
    %c0_i32 = arith.constant 0 : i32
    %c0_i32_0 = arith.constant 0 : i32
    %c0_i32_1 = arith.constant 0 : i32
    return %c0_i32, %c0_i32_0 : i32, i32
  }
  func.func @transform_5(%arg0: i32) -> (i32, i32) {
    %c0_i32 = arith.constant 0 : i32
    %c0_i32_0 = arith.constant 0 : i32
    %c0_i32_1 = arith.constant 0 : i32
    return %c0_i32, %c0_i32_0 : i32, i32
  }
  func.func @transform_6(%arg0: i32) -> (i32, i32) {
    %c0_i32 = arith.constant 0 : i32
    %c0_i32_0 = arith.constant 0 : i32
    %c0_i32_1 = arith.constant 0 : i32
    return %c0_i32, %c0_i32_0 : i32, i32
  }
  func.func @transform_7(%arg0: i32) -> (i32, i32) {
    %c0_i32 = arith.constant 0 : i32
    %c0_i32_0 = arith.constant 0 : i32
    %c0_i32_1 = arith.constant 0 : i32
    return %c0_i32, %c0_i32_0 : i32, i32
  }
  func.func @transform_8(%arg0: i32) -> (i32, i32) {
    %c0_i32 = arith.constant 0 : i32
    %c0_i32_0 = arith.constant 0 : i32
    %c0_i32_1 = arith.constant 0 : i32
    return %c0_i32, %c0_i32_0 : i32, i32
  }
  func.func @transform_9(%arg0: i32) -> (i32, i32) {
    %c0_i32 = arith.constant 0 : i32
    %c0_i32_0 = arith.constant 0 : i32
    %c0_i32_1 = arith.constant 0 : i32
    return %c0_i32, %c0_i32_0 : i32, i32
  }
  func.func @transform_10(%arg0: i32) -> (i32, i32) {
    %c0_i32 = arith.constant 0 : i32
    %c0_i32_0 = arith.constant 0 : i32
    %c0_i32_1 = arith.constant 0 : i32
    return %c0_i32, %c0_i32_0 : i32, i32
  }
  func.func @transform_11(%arg0: i32) -> (i32, i32) {
    %c0_i32 = arith.constant 0 : i32
    %c0_i32_0 = arith.constant 0 : i32
    return %c0_i32, %arg0 : i32, i32
  }
}

module attributes {stable_mosaic.version = 11 : i64} {
  func.func @_mlp_kernel(%arg0: i32, %arg1: memref<1x128xf32, #tpu.memory_space<vmem>>, %arg2: memref<64x1xf32, #tpu.memory_space<vmem>>, %arg3: memref<64x1xf32, #tpu.memory_space<vmem>>, %arg4: memref<64x64xf32, #tpu.memory_space<vmem>>, %arg5: memref<64x1xf32, #tpu.memory_space<vmem>>, %arg6: memref<64x64xf32, #tpu.memory_space<vmem>>, %arg7: memref<64x1xf32, #tpu.memory_space<vmem>>, %arg8: memref<64x64xf32, #tpu.memory_space<vmem>>, %arg9: memref<64x1xf32, #tpu.memory_space<vmem>>, %arg10: memref<1x64xf32, #tpu.memory_space<vmem>>, %arg11: memref<1x1xf32, #tpu.memory_space<vmem>>, %arg12: memref<1x128xf32, #tpu.memory_space<vmem>>) attributes {dimension_semantics = [#tpu.dimension_semantics<parallel>], iteration_bounds = array<i64: 1>, scalar_prefetch = 0 : i64, scratch_operands = 0 : i64, tpu.core_type = #tpu.core_type<tc>, window_params = [{transform_indices = @transform_0, window_bounds = array<i64: 1, 128>}, {pipeline_mode = #tpu.pipeline_mode<synchronous>, transform_indices = @transform_1, window_bounds = array<i64: 64, 1>}, {pipeline_mode = #tpu.pipeline_mode<synchronous>, transform_indices = @transform_2, window_bounds = array<i64: 64, 1>}, {pipeline_mode = #tpu.pipeline_mode<synchronous>, transform_indices = @transform_3, window_bounds = array<i64: 64, 64>}, {pipeline_mode = #tpu.pipeline_mode<synchronous>, transform_indices = @transform_4, window_bounds = array<i64: 64, 1>}, {pipeline_mode = #tpu.pipeline_mode<synchronous>, transform_indices = @transform_5, window_bounds = array<i64: 64, 64>}, {pipeline_mode = #tpu.pipeline_mode<synchronous>, transform_indices = @transform_6, window_bounds = array<i64: 64, 1>}, {pipeline_mode = #tpu.pipeline_mode<synchronous>, transform_indices = @transform_7, window_bounds = array<i64: 64, 64>}, {pipeline_mode = #tpu.pipeline_mode<synchronous>, transform_indices = @transform_8, window_bounds = array<i64: 64, 1>}, {pipeline_mode = #tpu.pipeline_mode<synchronous>, transform_indices = @transform_9, window_bounds = array<i64: 1, 64>}, {pipeline_mode = #tpu.pipeline_mode<synchronous>, transform_indices = @transform_10, window_bounds = array<i64: 1, 1>}, {transform_indices = @transform_11, window_bounds = array<i64: 1, 128>}]} {
    %c0 = arith.constant 0 : index
    %c0_0 = arith.constant 0 : index
    %0 = vector.load %arg1[%c0, %c0_0] : memref<1x128xf32, #tpu.memory_space<vmem>>, vector<1x128xf32>
    %c0_1 = arith.constant 0 : index
    %c0_2 = arith.constant 0 : index
    %1 = vector.load %arg2[%c0_1, %c0_2] : memref<64x1xf32, #tpu.memory_space<vmem>>, vector<64x1xf32>
    %2 = vector.broadcast %1 : vector<64x1xf32> to vector<64x128xf32>
    %3 = vector.broadcast %0 : vector<1x128xf32> to vector<64x128xf32>
    %4 = arith.mulf %2, %3 : vector<64x128xf32>
    %c0_3 = arith.constant 0 : index
    %c0_4 = arith.constant 0 : index
    %5 = vector.load %arg3[%c0_3, %c0_4] : memref<64x1xf32, #tpu.memory_space<vmem>>, vector<64x1xf32>
    %6 = vector.broadcast %5 : vector<64x1xf32> to vector<64x128xf32>
    %7 = arith.addf %4, %6 : vector<64x128xf32>
    %8 = math.tanh %7 : vector<64x128xf32>
    %c0_5 = arith.constant 0 : index
    %c0_6 = arith.constant 0 : index
    %9 = vector.load %arg4[%c0_5, %c0_6] : memref<64x64xf32, #tpu.memory_space<vmem>>, vector<64x64xf32>
    %cst = arith.constant dense<0.000000e+00> : vector<64x128xf32>
    %10 = tpu.matmul %9, %8, %cst {dimension_numbers = #tpu.dot_dimension_numbers<[1], [0], [0], [1], [0, 0, 1, 1], [], []>} : vector<64x64xf32>, vector<64x128xf32>, vector<64x128xf32> -> vector<64x128xf32>
    %c0_7 = arith.constant 0 : index
    %c0_8 = arith.constant 0 : index
    %11 = vector.load %arg5[%c0_7, %c0_8] : memref<64x1xf32, #tpu.memory_space<vmem>>, vector<64x1xf32>
    %12 = vector.broadcast %11 : vector<64x1xf32> to vector<64x128xf32>
    %13 = arith.addf %10, %12 : vector<64x128xf32>
    %14 = math.tanh %13 : vector<64x128xf32>
    %c0_9 = arith.constant 0 : index
    %c0_10 = arith.constant 0 : index
    %15 = vector.load %arg6[%c0_9, %c0_10] : memref<64x64xf32, #tpu.memory_space<vmem>>, vector<64x64xf32>
    %cst_11 = arith.constant dense<0.000000e+00> : vector<64x128xf32>
    %16 = tpu.matmul %15, %14, %cst_11 {dimension_numbers = #tpu.dot_dimension_numbers<[1], [0], [0], [1], [0, 0, 1, 1], [], []>} : vector<64x64xf32>, vector<64x128xf32>, vector<64x128xf32> -> vector<64x128xf32>
    %c0_12 = arith.constant 0 : index
    %c0_13 = arith.constant 0 : index
    %17 = vector.load %arg7[%c0_12, %c0_13] : memref<64x1xf32, #tpu.memory_space<vmem>>, vector<64x1xf32>
    %18 = vector.broadcast %17 : vector<64x1xf32> to vector<64x128xf32>
    %19 = arith.addf %16, %18 : vector<64x128xf32>
    %20 = math.tanh %19 : vector<64x128xf32>
    %c0_14 = arith.constant 0 : index
    %c0_15 = arith.constant 0 : index
    %21 = vector.load %arg8[%c0_14, %c0_15] : memref<64x64xf32, #tpu.memory_space<vmem>>, vector<64x64xf32>
    %cst_16 = arith.constant dense<0.000000e+00> : vector<64x128xf32>
    %22 = tpu.matmul %21, %20, %cst_16 {dimension_numbers = #tpu.dot_dimension_numbers<[1], [0], [0], [1], [0, 0, 1, 1], [], []>} : vector<64x64xf32>, vector<64x128xf32>, vector<64x128xf32> -> vector<64x128xf32>
    %c0_17 = arith.constant 0 : index
    %c0_18 = arith.constant 0 : index
    %23 = vector.load %arg9[%c0_17, %c0_18] : memref<64x1xf32, #tpu.memory_space<vmem>>, vector<64x1xf32>
    %24 = vector.broadcast %23 : vector<64x1xf32> to vector<64x128xf32>
    %25 = arith.addf %22, %24 : vector<64x128xf32>
    %26 = math.tanh %25 : vector<64x128xf32>
    %c0_19 = arith.constant 0 : index
    %c0_20 = arith.constant 0 : index
    %27 = vector.load %arg10[%c0_19, %c0_20] : memref<1x64xf32, #tpu.memory_space<vmem>>, vector<1x64xf32>
    %cst_21 = arith.constant dense<0.000000e+00> : vector<1x128xf32>
    %28 = tpu.matmul %27, %26, %cst_21 {dimension_numbers = #tpu.dot_dimension_numbers<[1], [0], [0], [1], [0, 0, 1, 1], [], []>} : vector<1x64xf32>, vector<64x128xf32>, vector<1x128xf32> -> vector<1x128xf32>
    %c0_22 = arith.constant 0 : index
    %c0_23 = arith.constant 0 : index
    %29 = vector.load %arg11[%c0_22, %c0_23] : memref<1x1xf32, #tpu.memory_space<vmem>>, vector<1x1xf32>
    %30 = vector.broadcast %29 : vector<1x1xf32> to vector<1x128xf32>
    %31 = arith.addf %28, %30 : vector<1x128xf32>
    %c0_24 = arith.constant 0 : index
    %c0_25 = arith.constant 0 : index
    %32 = vector.load %arg12[%c0_24, %c0_25] : memref<1x128xf32, #tpu.memory_space<vmem>>, vector<1x128xf32>
    tpu.vector_store %arg12[%c0_24, %c0_25], %31 {strides = array<i32>} : memref<1x128xf32, #tpu.memory_space<vmem>>, vector<1x128xf32>,
    return
  }
  func.func @transform_0(%arg0: i32) -> (i32, i32) {
    %c0_i32 = arith.constant 0 : i32
    %c0_i32_0 = arith.constant 0 : i32
    return %c0_i32, %arg0 : i32, i32
  }
  func.func @transform_1(%arg0: i32) -> (i32, i32) {
    %c0_i32 = arith.constant 0 : i32
    %c0_i32_0 = arith.constant 0 : i32
    %c0_i32_1 = arith.constant 0 : i32
    return %c0_i32, %c0_i32_0 : i32, i32
  }
  func.func @transform_2(%arg0: i32) -> (i32, i32) {
    %c0_i32 = arith.constant 0 : i32
    %c0_i32_0 = arith.constant 0 : i32
    %c0_i32_1 = arith.constant 0 : i32
    return %c0_i32, %c0_i32_0 : i32, i32
  }
  func.func @transform_3(%arg0: i32) -> (i32, i32) {
    %c0_i32 = arith.constant 0 : i32
    %c0_i32_0 = arith.constant 0 : i32
    %c0_i32_1 = arith.constant 0 : i32
    return %c0_i32, %c0_i32_0 : i32, i32
  }
  func.func @transform_4(%arg0: i32) -> (i32, i32) {
    %c0_i32 = arith.constant 0 : i32
    %c0_i32_0 = arith.constant 0 : i32
    %c0_i32_1 = arith.constant 0 : i32
    return %c0_i32, %c0_i32_0 : i32, i32
  }
  func.func @transform_5(%arg0: i32) -> (i32, i32) {
    %c0_i32 = arith.constant 0 : i32
    %c0_i32_0 = arith.constant 0 : i32
    %c0_i32_1 = arith.constant 0 : i32
    return %c0_i32, %c0_i32_0 : i32, i32
  }
  func.func @transform_6(%arg0: i32) -> (i32, i32) {
    %c0_i32 = arith.constant 0 : i32
    %c0_i32_0 = arith.constant 0 : i32
    %c0_i32_1 = arith.constant 0 : i32
    return %c0_i32, %c0_i32_0 : i32, i32
  }
  func.func @transform_7(%arg0: i32) -> (i32, i32) {
    %c0_i32 = arith.constant 0 : i32
    %c0_i32_0 = arith.constant 0 : i32
    %c0_i32_1 = arith.constant 0 : i32
    return %c0_i32, %c0_i32_0 : i32, i32
  }
  func.func @transform_8(%arg0: i32) -> (i32, i32) {
    %c0_i32 = arith.constant 0 : i32
    %c0_i32_0 = arith.constant 0 : i32
    %c0_i32_1 = arith.constant 0 : i32
    return %c0_i32, %c0_i32_0 : i32, i32
  }
  func.func @transform_9(%arg0: i32) -> (i32, i32) {
    %c0_i32 = arith.constant 0 : i32
    %c0_i32_0 = arith.constant 0 : i32
    %c0_i32_1 = arith.constant 0 : i32
    return %c0_i32, %c0_i32_0 : i32, i32
  }
  func.func @transform_10(%arg0: i32) -> (i32, i32) {
    %c0_i32 = arith.constant 0 : i32
    %c0_i32_0 = arith.constant 0 : i32
    %c0_i32_1 = arith.constant 0 : i32
    return %c0_i32, %c0_i32_0 : i32, i32
  }
  func.func @transform_11(%arg0: i32) -> (i32, i32) {
    %c0_i32 = arith.constant 0 : i32
    %c0_i32_0 = arith.constant 0 : i32
    return %c0_i32, %arg0 : i32, i32
  }
}

</mosaic_0001>

<llo_original>
// kernel: tpu_custom_call.1
$region0: #{tpu_custom_call.1}
  #allocation0 [shape = 'u32[]', space=smem, size = 0x4, offset = 0x4, fixed_abs, tag = 'smem constant byte address 0x4 - core index']
  #allocation1 [shape = 'u32[72,128]{1,0:T(1,128)}', space=vmem, size = 0x9000, scoped, tag = 'internal scratch']
  #allocation2 [shape = 'f32[1,1]{1,0:T(1,128)S(1)}', space=vmem, size = 0x200, scoped, tag = 'scoped memory for tpu_custom_call.1']
  %s0 = inlined_call_operand.vmem [shape: f32[1,128], index: 0, kind: input, shape index: {}]
  %s1 = inlined_call_operand.vmem [shape: f32[64,1], index: 1, kind: input, shape index: {}]
  %s2 = inlined_call_operand.vmem [shape: f32[64,1], index: 2, kind: input, shape index: {}]
  %s3 = inlined_call_operand.vmem [shape: f32[64,64], index: 3, kind: input, shape index: {}]
  %s4 = inlined_call_operand.vmem [shape: f32[64,1], index: 4, kind: input, shape index: {}]
  %s5 = inlined_call_operand.vmem [shape: f32[64,64], index: 5, kind: input, shape index: {}]
  %s6 = inlined_call_operand.vmem [shape: f32[64,1], index: 6, kind: input, shape index: {}]
  %s7 = inlined_call_operand.vmem [shape: f32[64,64], index: 7, kind: input, shape index: {}]
  %s8 = inlined_call_operand.vmem [shape: f32[64,1], index: 8, kind: input, shape index: {}]
  %s9 = inlined_call_operand.vmem [shape: f32[1,64], index: 9, kind: input, shape index: {}]
  %s10 = inlined_call_operand.<no memory space> [shape: f32[1,1], index: 10, kind: input, shape index: {}]
  %s11 = inlined_call_operand.hbm [shape: f32[1,128], index: 11, kind: output, shape index: {}]
  %s12 = sld [smem:[#allocation0]]
  $region54: #{tpu_custom_call.1} parent=0
    _
  %s14 = ssub.s32 1, %s12
  %s15 = scalar_select 0, %s14, %s12
  %v16 = vstv %s10
  %17 = vst [vmem:[#allocation2] sm:$0x1] %v16
  $region1: #{tpu_custom_call.1} parent=0
    #allocation3 [shape = 'u8[512]{0}', space=vmem, size = 0x400, scoped, tag = 'output window, operand 0, single buffered']
    #allocation4 [shape = 's32[1]{0}', space=sflag, size = 0x4, scoped, tag = 'scoped memory for tpu_custom_call.1']
    %18 = vsyncpa [#allocation4], 0
    // Predicated region
    $region2: #{tpu_custom_call.1} parent=1 // pred_check
      _
    $region3: #{tpu_custom_call.1} parent=1 // pred_check_branch
      %20 = sbr.rel (0) target = $region5
    $region4: #{tpu_custom_call.1} parent=1 // pred_region
      _
    $region5: #{tpu_custom_call.1} parent=1 // pred_fallthru
      _
    // Predicated region
    $region6: #{tpu_custom_call.1} parent=1 // pred_check
      _
    $region7: #{tpu_custom_call.1} parent=1 // pred_check_branch
      %22 = sbr.rel (0) target = $region9
    $region8: #{tpu_custom_call.1} parent=1 // pred_region
      _
    $region9: #{tpu_custom_call.1} parent=1 // pred_fallthru
      _
    // Predicated region
    $region10: #{tpu_custom_call.1} parent=1 // pred_check
      _
    $region11: #{tpu_custom_call.1} parent=1 // pred_check_branch
      %24 = sbr.rel (0) target = $region13
    $region12: #{tpu_custom_call.1} parent=1 // pred_region
      _
    $region13: #{tpu_custom_call.1} parent=1 // pred_fallthru
      _
    // Predicated region
    $region14: #{tpu_custom_call.1} parent=1 // pred_check
      _
    $region15: #{tpu_custom_call.1} parent=1 // pred_check_branch
      %26 = sbr.rel (0) target = $region17
    $region16: #{tpu_custom_call.1} parent=1 // pred_region
      _
    $region17: #{tpu_custom_call.1} parent=1 // pred_fallthru
      _
    // Predicated region
    $region18: #{tpu_custom_call.1} parent=1 // pred_check
      _
    $region19: #{tpu_custom_call.1} parent=1 // pred_check_branch
      %28 = sbr.rel (0) target = $region21
    $region20: #{tpu_custom_call.1} parent=1 // pred_region
      _
    $region21: #{tpu_custom_call.1} parent=1 // pred_fallthru
      _
    // Predicated region
    $region22: #{tpu_custom_call.1} parent=1 // pred_check
      _
    $region23: #{tpu_custom_call.1} parent=1 // pred_check_branch
      %30 = sbr.rel (0) target = $region25
    $region24: #{tpu_custom_call.1} parent=1 // pred_region
      _
    $region25: #{tpu_custom_call.1} parent=1 // pred_fallthru
      _
    // Predicated region
    $region26: #{tpu_custom_call.1} parent=1 // pred_check
      _
    $region27: #{tpu_custom_call.1} parent=1 // pred_check_branch
      %32 = sbr.rel (0) target = $region29
    $region28: #{tpu_custom_call.1} parent=1 // pred_region
      _
    $region29: #{tpu_custom_call.1} parent=1 // pred_fallthru
      _
    // Predicated region
    $region30: #{tpu_custom_call.1} parent=1 // pred_check
      _
    $region31: #{tpu_custom_call.1} parent=1 // pred_check_branch
      %34 = sbr.rel (0) target = $region33
    $region32: #{tpu_custom_call.1} parent=1 // pred_region
      _
    $region33: #{tpu_custom_call.1} parent=1 // pred_fallthru
      _
    // Predicated region
    $region34: #{tpu_custom_call.1} parent=1 // pred_check
      _
    $region35: #{tpu_custom_call.1} parent=1 // pred_check_branch
      %36 = sbr.rel (0) target = $region37
    $region36: #{tpu_custom_call.1} parent=1 // pred_region
      _
    $region37: #{tpu_custom_call.1} parent=1 // pred_fallthru
      _
    // Predicated region
    $region38: #{tpu_custom_call.1} parent=1 // pred_check
      _
    $region39: #{tpu_custom_call.1} parent=1 // pred_check_branch
      %38 = sbr.rel (0) target = $region41
    $region40: #{tpu_custom_call.1} parent=1 // pred_region
      _
    $region41: #{tpu_custom_call.1} parent=1 // pred_fallthru
      _
    // Predicated region
    $region42: #{tpu_custom_call.1} parent=1 // pred_check
      _
    $region43: #{tpu_custom_call.1} parent=1 // pred_check_branch
      %40 = sbr.rel (0) target = $region45
    $region44: #{tpu_custom_call.1} parent=1 // pred_region
      _
    $region45: #{tpu_custom_call.1} parent=1 // pred_fallthru
      _
    %v41 = vld [vmem:[%s0] sm:$0x1]
    %v42 = vld [vmem:[%s1] sm:$0xff]
    %v43 = vld [vmem:[%s1 + $0x8] sm:$0xff]
    %v44 = vld [vmem:[%s1 + $0x10] sm:$0xff]
    %v45 = vld [vmem:[%s1 + $0x18] sm:$0xff]
    %v46 = vld [vmem:[%s1 + $0x20] sm:$0xff]
    %v47 = vld [vmem:[%s1 + $0x28] sm:$0xff]
    %v48 = vld [vmem:[%s1 + $0x30] sm:$0xff]
    %v49 = vld [vmem:[%s1 + $0x38] sm:$0xff]
    %51 = vset.pattern.permute.xlu0 0
    %52 = vperm.xlu0 %51, %v42
    %v53 = vpop.permute.xlu0 %52
    %56 = vset.pattern.permute.xlu0 0
    %57 = vperm.xlu0 %56, %v43
    %v58 = vpop.permute.xlu0 %57
    %61 = vset.pattern.permute.xlu0 0
    %62 = vperm.xlu0 %61, %v44
    %v63 = vpop.permute.xlu0 %62
    %66 = vset.pattern.permute.xlu0 0
    %67 = vperm.xlu0 %66, %v45
    %v68 = vpop.permute.xlu0 %67
    %71 = vset.pattern.permute.xlu0 0
    %72 = vperm.xlu0 %71, %v46
    %v73 = vpop.permute.xlu0 %72
    %76 = vset.pattern.permute.xlu0 0
    %77 = vperm.xlu0 %76, %v47
    %v78 = vpop.permute.xlu0 %77
    %81 = vset.pattern.permute.xlu0 0
    %82 = vperm.xlu0 %81, %v48
    %v83 = vpop.permute.xlu0 %82
    %86 = vset.pattern.permute.xlu0 0
    %87 = vperm.xlu0 %86, %v49
    %v88 = vpop.permute.xlu0 %87
    %v91 = vperm.slane %v41, 0
    %v93 = vmul.f32 %v53, %v91
    %v94 = vmul.f32 %v58, %v91
    %v95 = vmul.f32 %v63, %v91
    %v96 = vmul.f32 %v68, %v91
    %v97 = vmul.f32 %v73, %v91
    %v98 = vmul.f32 %v78, %v91
    %v99 = vmul.f32 %v83, %v91
    %v100 = vmul.f32 %v88, %v91
    %v101 = vld [vmem:[%s2] sm:$0xff]
    %v102 = vld [vmem:[%s2 + $0x8] sm:$0xff]
    %v103 = vld [vmem:[%s2 + $0x10] sm:$0xff]
    %v104 = vld [vmem:[%s2 + $0x18] sm:$0xff]
    %v105 = vld [vmem:[%s2 + $0x20] sm:$0xff]
    %v106 = vld [vmem:[%s2 + $0x28] sm:$0xff]
    %v107 = vld [vmem:[%s2 + $0x30] sm:$0xff]
    %v108 = vld [vmem:[%s2 + $0x38] sm:$0xff]
    %110 = vset.pattern.permute.xlu0 0
    %111 = vperm.xlu0 %110, %v101
    %v112 = vpop.permute.xlu0 %111
    %115 = vset.pattern.permute.xlu0 0
    %116 = vperm.xlu0 %115, %v102
    %v117 = vpop.permute.xlu0 %116
    %120 = vset.pattern.permute.xlu0 0
    %121 = vperm.xlu0 %120, %v103
    %v122 = vpop.permute.xlu0 %121
    %125 = vset.pattern.permute.xlu0 0
    %126 = vperm.xlu0 %125, %v104
    %v127 = vpop.permute.xlu0 %126
    %130 = vset.pattern.permute.xlu0 0
    %131 = vperm.xlu0 %130, %v105
    %v132 = vpop.permute.xlu0 %131
    %135 = vset.pattern.permute.xlu0 0
    %136 = vperm.xlu0 %135, %v106
    %v137 = vpop.permute.xlu0 %136
    %140 = vset.pattern.permute.xlu0 0
    %141 = vperm.xlu0 %140, %v107
    %v142 = vpop.permute.xlu0 %141
    %145 = vset.pattern.permute.xlu0 0
    %146 = vperm.xlu0 %145, %v108
    %v147 = vpop.permute.xlu0 %146
    %v149 = vadd.f32 %v93, %v112
    %v150 = vadd.f32 %v94, %v117
    %v151 = vadd.f32 %v95, %v122
    %v152 = vadd.f32 %v96, %v127
    %v153 = vadd.f32 %v97, %v132
    %v154 = vadd.f32 %v98, %v137
    %v155 = vadd.f32 %v99, %v142
    %v156 = vadd.f32 %v100, %v147
    %v157 = vtanh.pop %v149
    %v158 = vtanh.pop %v150
    %v159 = vtanh.pop %v151
    %v160 = vtanh.pop %v152
    %v161 = vtanh.pop %v153
    %v162 = vtanh.pop %v154
    %v163 = vtanh.pop %v155
    %v164 = vtanh.pop %v156
    %v165 = vld [vmem:[%s3] sm:$0xff]
    %v166 = vld [vmem:[%s3 + $0x8] sm:$0xff]
    %v167 = vld [vmem:[%s3 + $0x10] sm:$0xff]
    %v168 = vld [vmem:[%s3 + $0x18] sm:$0xff]
    %v169 = vld [vmem:[%s3 + $0x20] sm:$0xff]
    %v170 = vld [vmem:[%s3 + $0x28] sm:$0xff]
    %v171 = vld [vmem:[%s3 + $0x30] sm:$0xff]
    %v172 = vld [vmem:[%s3 + $0x38] sm:$0xff]
    %v173 = vld [vmem:[%s4] sm:$0xff]
    %v174 = vld [vmem:[%s4 + $0x8] sm:$0xff]
    %v175 = vld [vmem:[%s4 + $0x10] sm:$0xff]
    %v176 = vld [vmem:[%s4 + $0x18] sm:$0xff]
    %v177 = vld [vmem:[%s4 + $0x20] sm:$0xff]
    %v178 = vld [vmem:[%s4 + $0x28] sm:$0xff]
    %v179 = vld [vmem:[%s4 + $0x30] sm:$0xff]
    %v180 = vld [vmem:[%s4 + $0x38] sm:$0xff]
    %182 = vset.pattern.permute.xlu0 0
    %183 = vperm.xlu0 %182, %v173
    %v184 = vpop.permute.xlu0 %183
    %187 = vset.pattern.permute.xlu0 0
    %188 = vperm.xlu0 %187, %v174
    %v189 = vpop.permute.xlu0 %188
    %192 = vset.pattern.permute.xlu0 0
    %193 = vperm.xlu0 %192, %v175
    %v194 = vpop.permute.xlu0 %193
    %197 = vset.pattern.permute.xlu0 0
    %198 = vperm.xlu0 %197, %v176
    %v199 = vpop.permute.xlu0 %198
    %202 = vset.pattern.permute.xlu0 0
    %203 = vperm.xlu0 %202, %v177
    %v204 = vpop.permute.xlu0 %203
    %207 = vset.pattern.permute.xlu0 0
    %208 = vperm.xlu0 %207, %v178
    %v209 = vpop.permute.xlu0 %208
    %212 = vset.pattern.permute.xlu0 0
    %213 = vperm.xlu0 %212, %v179
    %v214 = vpop.permute.xlu0 %213
    %217 = vset.pattern.permute.xlu0 0
    %218 = vperm.xlu0 %217, %v180
    %v219 = vpop.permute.xlu0 %218
    %vm221 = vcmask 523264
    %v223 = vsel %vm221, %v165, 0
    %v226 = vsel %vm221, %v166, 0
    %v229 = vsel %vm221, %v167, 0
    %v232 = vsel %vm221, %v168, 0
    %v235 = vsel %vm221, %v169, 0
    %v238 = vsel %vm221, %v170, 0
    %v241 = vsel %vm221, %v171, 0
    %v244 = vsel %vm221, %v172, 0
    %246 = vmatpush.msra.mxu0 0.0
    %247 = vmatpush.msra.mxu0 0.0
    %248 = vmatpush.msra.mxu0 0.0
    %249 = vmatpush.msra.mxu0 0.0
    %250 = vmatpush.msra.mxu0 0.0
    %251 = vmatpush.msra.mxu0 0.0
    %252 = vmatpush.msra.mxu0 0.0
    %253 = vmatpush.msra.mxu0 0.0
    %254 = vmatpush.msra.mxu0 %v164
    %255 = vmatpush.msra.mxu0 %v163
    %256 = vmatpush.msra.mxu0 %v162
    %257 = vmatpush.msra.mxu0 %v161
    %258 = vmatpush.msra.mxu0 %v160
    %259 = vmatpush.msra.mxu0 %v159
    %260 = vmatpush.msra.mxu0 %v158
    %261 = vmatpush.msra.mxu0 %v157
    %262 = vmatmul.f32.gmra.mxu0 %v223
    %v263 = vpop.f32.mrf.mxu0
    %v264 = vadd.f32 %v184, %v263
    %265 = vmatmul.f32.gmra.mxu0 %v226
    %v266 = vpop.f32.mrf.mxu0
    %v267 = vadd.f32 %v189, %v266
    %268 = vmatmul.f32.gmra.mxu0 %v229
    %v269 = vpop.f32.mrf.mxu0
    %v270 = vadd.f32 %v194, %v269
    %271 = vmatmul.f32.gmra.mxu0 %v232
    %v272 = vpop.f32.mrf.mxu0
    %v273 = vadd.f32 %v199, %v272
    %274 = vmatmul.f32.gmra.mxu0 %v235
    %v275 = vpop.f32.mrf.mxu0
    %v276 = vadd.f32 %v204, %v275
    %277 = vmatmul.f32.gmra.mxu0 %v238
    %v278 = vpop.f32.mrf.mxu0
    %v279 = vadd.f32 %v209, %v278
    %280 = vmatmul.f32.gmra.mxu0 %v241
    %v281 = vpop.f32.mrf.mxu0
    %v282 = vadd.f32 %v214, %v281
    %283 = vmatmul.f32.gmra.mxu0 %v244
    %v284 = vpop.f32.mrf.mxu0
    %v285 = vadd.f32 %v219, %v284
    %286 = vdwg.mxu0
    %v287 = vtanh.pop %v264
    %v288 = vtanh.pop %v267
    %v289 = vtanh.pop %v270
    %v290 = vtanh.pop %v273
    %v291 = vtanh.pop %v276
    %v292 = vtanh.pop %v279
    %v293 = vtanh.pop %v282
    %v294 = vtanh.pop %v285
    %v295 = vld [vmem:[%s5] sm:$0xff]
    %v296 = vld [vmem:[%s5 + $0x8] sm:$0xff]
    %v297 = vld [vmem:[%s5 + $0x10] sm:$0xff]
    %v298 = vld [vmem:[%s5 + $0x18] sm:$0xff]
    %v299 = vld [vmem:[%s5 + $0x20] sm:$0xff]
    %v300 = vld [vmem:[%s5 + $0x28] sm:$0xff]
    %v301 = vld [vmem:[%s5 + $0x30] sm:$0xff]
    %v302 = vld [vmem:[%s5 + $0x38] sm:$0xff]
    %v303 = vld [vmem:[%s6] sm:$0xff]
    %v304 = vld [vmem:[%s6 + $0x8] sm:$0xff]
    %v305 = vld [vmem:[%s6 + $0x10] sm:$0xff]
    %v306 = vld [vmem:[%s6 + $0x18] sm:$0xff]
    %v307 = vld [vmem:[%s6 + $0x20] sm:$0xff]
    %v308 = vld [vmem:[%s6 + $0x28] sm:$0xff]
    %v309 = vld [vmem:[%s6 + $0x30] sm:$0xff]
    %v310 = vld [vmem:[%s6 + $0x38] sm:$0xff]
    %312 = vset.pattern.permute.xlu0 0
    %313 = vperm.xlu0 %312, %v303
    %v314 = vpop.permute.xlu0 %313
    %317 = vset.pattern.permute.xlu0 0
    %318 = vperm.xlu0 %317, %v304
    %v319 = vpop.permute.xlu0 %318
    %322 = vset.pattern.permute.xlu0 0
    %323 = vperm.xlu0 %322, %v305
    %v324 = vpop.permute.xlu0 %323
    %327 = vset.pattern.permute.xlu0 0
    %328 = vperm.xlu0 %327, %v306
    %v329 = vpop.permute.xlu0 %328
    %332 = vset.pattern.permute.xlu0 0
    %333 = vperm.xlu0 %332, %v307
    %v334 = vpop.permute.xlu0 %333
    %337 = vset.pattern.permute.xlu0 0
    %338 = vperm.xlu0 %337, %v308
    %v339 = vpop.permute.xlu0 %338
    %342 = vset.pattern.permute.xlu0 0
    %343 = vperm.xlu0 %342, %v309
    %v344 = vpop.permute.xlu0 %343
    %347 = vset.pattern.permute.xlu0 0
    %348 = vperm.xlu0 %347, %v310
    %v349 = vpop.permute.xlu0 %348
    %v352 = vsel %vm221, %v295, 0
    %v355 = vsel %vm221, %v296, 0
    %v358 = vsel %vm221, %v297, 0
    %v361 = vsel %vm221, %v298, 0
    %v364 = vsel %vm221, %v299, 0
    %v367 = vsel %vm221, %v300, 0
    %v370 = vsel %vm221, %v301, 0
    %v373 = vsel %vm221, %v302, 0
    %375 = vmatpush.msra.mxu0 0.0
    %376 = vmatpush.msra.mxu0 0.0
    %377 = vmatpush.msra.mxu0 0.0
    %378 = vmatpush.msra.mxu0 0.0
    %379 = vmatpush.msra.mxu0 0.0
    %380 = vmatpush.msra.mxu0 0.0
    %381 = vmatpush.msra.mxu0 0.0
    %382 = vmatpush.msra.mxu0 0.0
    %383 = vmatpush.msra.mxu0 %v294
    %384 = vmatpush.msra.mxu0 %v293
    %385 = vmatpush.msra.mxu0 %v292
    %386 = vmatpush.msra.mxu0 %v291
    %387 = vmatpush.msra.mxu0 %v290
    %388 = vmatpush.msra.mxu0 %v289
    %389 = vmatpush.msra.mxu0 %v288
    %390 = vmatpush.msra.mxu0 %v287
    %391 = vmatmul.f32.gmra.mxu0 %v352
    %v392 = vpop.f32.mrf.mxu0
    %v393 = vadd.f32 %v314, %v392
    %394 = vmatmul.f32.gmra.mxu0 %v355
    %v395 = vpop.f32.mrf.mxu0
    %v396 = vadd.f32 %v319, %v395
    %397 = vmatmul.f32.gmra.mxu0 %v358
    %v398 = vpop.f32.mrf.mxu0
    %v399 = vadd.f32 %v324, %v398
    %400 = vmatmul.f32.gmra.mxu0 %v361
    %v401 = vpop.f32.mrf.mxu0
    %v402 = vadd.f32 %v329, %v401
    %403 = vmatmul.f32.gmra.mxu0 %v364
    %v404 = vpop.f32.mrf.mxu0
    %v405 = vadd.f32 %v334, %v404
    %406 = vmatmul.f32.gmra.mxu0 %v367
    %v407 = vpop.f32.mrf.mxu0
    %v408 = vadd.f32 %v339, %v407
    %409 = vmatmul.f32.gmra.mxu0 %v370
    %v410 = vpop.f32.mrf.mxu0
    %v411 = vadd.f32 %v344, %v410
    %412 = vmatmul.f32.gmra.mxu0 %v373
    %v413 = vpop.f32.mrf.mxu0
    %v414 = vadd.f32 %v349, %v413
    %415 = vdwg.mxu0
    %v416 = vtanh.pop %v393
    %v417 = vtanh.pop %v396
    %v418 = vtanh.pop %v399
    %v419 = vtanh.pop %v402
    %v420 = vtanh.pop %v405
    %v421 = vtanh.pop %v408
    %v422 = vtanh.pop %v411
    %v423 = vtanh.pop %v414
    %v424 = vld [vmem:[%s7] sm:$0xff]
    %v425 = vld [vmem:[%s7 + $0x8] sm:$0xff]
    %v426 = vld [vmem:[%s7 + $0x10] sm:$0xff]
    %v427 = vld [vmem:[%s7 + $0x18] sm:$0xff]
    %v428 = vld [vmem:[%s7 + $0x20] sm:$0xff]
    %v429 = vld [vmem:[%s7 + $0x28] sm:$0xff]
    %v430 = vld [vmem:[%s7 + $0x30] sm:$0xff]
    %v431 = vld [vmem:[%s7 + $0x38] sm:$0xff]
    %v432 = vld [vmem:[%s8] sm:$0xff]
    %v433 = vld [vmem:[%s8 + $0x8] sm:$0xff]
    %v434 = vld [vmem:[%s8 + $0x10] sm:$0xff]
    %v435 = vld [vmem:[%s8 + $0x18] sm:$0xff]
    %v436 = vld [vmem:[%s8 + $0x20] sm:$0xff]
    %v437 = vld [vmem:[%s8 + $0x28] sm:$0xff]
    %v438 = vld [vmem:[%s8 + $0x30] sm:$0xff]
    %v439 = vld [vmem:[%s8 + $0x38] sm:$0xff]
    %441 = vset.pattern.permute.xlu0 0
    %442 = vperm.xlu0 %441, %v432
    %v443 = vpop.permute.xlu0 %442
    %446 = vset.pattern.permute.xlu0 0
    %447 = vperm.xlu0 %446, %v433
    %v448 = vpop.permute.xlu0 %447
    %451 = vset.pattern.permute.xlu0 0
    %452 = vperm.xlu0 %451, %v434
    %v453 = vpop.permute.xlu0 %452
    %456 = vset.pattern.permute.xlu0 0
    %457 = vperm.xlu0 %456, %v435
    %v458 = vpop.permute.xlu0 %457
    %461 = vset.pattern.permute.xlu0 0
    %462 = vperm.xlu0 %461, %v436
    %v463 = vpop.permute.xlu0 %462
    %466 = vset.pattern.permute.xlu0 0
    %467 = vperm.xlu0 %466, %v437
    %v468 = vpop.permute.xlu0 %467
    %471 = vset.pattern.permute.xlu0 0
    %472 = vperm.xlu0 %471, %v438
    %v473 = vpop.permute.xlu0 %472
    %476 = vset.pattern.permute.xlu0 0
    %477 = vperm.xlu0 %476, %v439
    %v478 = vpop.permute.xlu0 %477
    %v481 = vsel %vm221, %v424, 0
    %v484 = vsel %vm221, %v425, 0
    %v487 = vsel %vm221, %v426, 0
    %v490 = vsel %vm221, %v427, 0
    %v493 = vsel %vm221, %v428, 0
    %v496 = vsel %vm221, %v429, 0
    %v499 = vsel %vm221, %v430, 0
    %v502 = vsel %vm221, %v431, 0
    %504 = vmatpush.msra.mxu0 0.0
    %505 = vmatpush.msra.mxu0 0.0
    %506 = vmatpush.msra.mxu0 0.0
    %507 = vmatpush.msra.mxu0 0.0
    %508 = vmatpush.msra.mxu0 0.0
    %509 = vmatpush.msra.mxu0 0.0
    %510 = vmatpush.msra.mxu0 0.0
    %511 = vmatpush.msra.mxu0 0.0
    %512 = vmatpush.msra.mxu0 %v423
    %513 = vmatpush.msra.mxu0 %v422
    %514 = vmatpush.msra.mxu0 %v421
    %515 = vmatpush.msra.mxu0 %v420
    %516 = vmatpush.msra.mxu0 %v419
    %517 = vmatpush.msra.mxu0 %v418
    %518 = vmatpush.msra.mxu0 %v417
    %519 = vmatpush.msra.mxu0 %v416
    %520 = vmatmul.f32.gmra.mxu0 %v481
    %v521 = vpop.f32.mrf.mxu0
    %v522 = vadd.f32 %v443, %v521
    %523 = vmatmul.f32.gmra.mxu0 %v484
    %v524 = vpop.f32.mrf.mxu0
    %v525 = vadd.f32 %v448, %v524
    %526 = vmatmul.f32.gmra.mxu0 %v487
    %v527 = vpop.f32.mrf.mxu0
    %v528 = vadd.f32 %v453, %v527
    %529 = vmatmul.f32.gmra.mxu0 %v490
    %v530 = vpop.f32.mrf.mxu0
    %v531 = vadd.f32 %v458, %v530
    %532 = vmatmul.f32.gmra.mxu0 %v493
    %v533 = vpop.f32.mrf.mxu0
    %v534 = vadd.f32 %v463, %v533
    %535 = vmatmul.f32.gmra.mxu0 %v496
    %v536 = vpop.f32.mrf.mxu0
    %v537 = vadd.f32 %v468, %v536
    %538 = vmatmul.f32.gmra.mxu0 %v499
    %v539 = vpop.f32.mrf.mxu0
    %v540 = vadd.f32 %v473, %v539
    %541 = vmatmul.f32.gmra.mxu0 %v502
    %v542 = vpop.f32.mrf.mxu0
    %v543 = vadd.f32 %v478, %v542
    %544 = vdwg.mxu0
    %v545 = vtanh.pop %v522
    %v546 = vtanh.pop %v525
    %v547 = vtanh.pop %v528
    %v548 = vtanh.pop %v531
    %v549 = vtanh.pop %v534
    %v550 = vtanh.pop %v537
    %v551 = vtanh.pop %v540
    %v552 = vtanh.pop %v543
    %v553 = vld [vmem:[%s9] sm:$0x1]
    %v554 = vld [vmem:[#allocation2] sm:$0x1]
    %556 = vset.pattern.permute.xlu0 0
    %557 = vperm.xlu0 %556, %v554
    %v558 = vpop.permute.xlu0 %557
    %v560 = vperm.slane %v558, 0
    %v562 = vsel %vm221, %v553, 0
    %564 = vmatpush.msra.mxu0 0.0
    %565 = vmatpush.msra.mxu0 0.0
    %566 = vmatpush.msra.mxu0 0.0
    %567 = vmatpush.msra.mxu0 0.0
    %568 = vmatpush.msra.mxu0 0.0
    %569 = vmatpush.msra.mxu0 0.0
    %570 = vmatpush.msra.mxu0 0.0
    %571 = vmatpush.msra.mxu0 0.0
    %572 = vmatpush.msra.mxu0 %v552
    %573 = vmatpush.msra.mxu0 %v551
    %574 = vmatpush.msra.mxu0 %v550
    %575 = vmatpush.msra.mxu0 %v549
    %576 = vmatpush.msra.mxu0 %v548
    %577 = vmatpush.msra.mxu0 %v547
    %578 = vmatpush.msra.mxu0 %v546
    %579 = vmatpush.msra.mxu0 %v545
    %580 = vmatmul.f32.gmra.mxu0 %v562
    %v581 = vpop.f32.mrf.mxu0
    %v582 = vadd.f32 %v560, %v581
    %583 = vdwg.mxu0
    %584 = vst [vmem:[#allocation3] sm:$0x1] %v582
    // Predicated region
    $region46: #{tpu_custom_call.1} parent=1 // pred_check
      _
    $region47: #{tpu_custom_call.1} parent=1 // pred_check_branch
      %586 = sbr.rel (0) target = $region49
    $region48: #{tpu_custom_call.1} parent=1 // pred_region
      %588 = vsyncadd [#allocation4], 0
      %s590 = sshll.u32 [#allocation3], 4
      %s591 = int_to_ptr.vmem [resolvable:$true] %s590
      %s592 = sshll.u32 %s11, 4
      %s593 = int_to_ptr.hbm [resolvable:$true] %s592
      %595 = dma.vmem_to_hbm [thread:$0]  %s591, 16, %s593, [#allocation4]
    $region49: #{tpu_custom_call.1} parent=1 // pred_fallthru
      _
    // Predicated region
    $region50: #{tpu_custom_call.1} parent=1 // pred_check
      _
    $region51: #{tpu_custom_call.1} parent=1 // pred_check_branch
      %597 = sbr.rel (0) target = $region53
    $region52: #{tpu_custom_call.1} parent=1 // pred_region
      %599 = dma.done [#allocation4], 16
    $region53: #{tpu_custom_call.1} parent=1 // pred_fallthru
      _
    %600 = vsyncpa [#allocation4], 1

// kernel: tpu_custom_call.1
$region0: #{tpu_custom_call.1}
  #allocation0 [shape = 'u32[]', space=smem, size = 0x4, offset = 0x4, fixed_abs, tag = 'smem constant byte address 0x4 - core index']
  #allocation1 [shape = 'u32[72,128]{1,0:T(1,128)}', space=vmem, size = 0x9000, scoped, tag = 'internal scratch']
  #allocation2 [shape = 'f32[1,1]{1,0:T(1,128)S(1)}', space=vmem, size = 0x200, scoped, tag = 'scoped memory for tpu_custom_call.1']
  %s0 = inlined_call_operand.vmem [shape: f32[1,128], index: 0, kind: input, shape index: {}]
  %s1 = inlined_call_operand.vmem [shape: f32[64,1], index: 1, kind: input, shape index: {}]
  %s2 = inlined_call_operand.vmem [shape: f32[64,1], index: 2, kind: input, shape index: {}]
  %s3 = inlined_call_operand.vmem [shape: f32[64,64], index: 3, kind: input, shape index: {}]
  %s4 = inlined_call_operand.vmem [shape: f32[64,1], index: 4, kind: input, shape index: {}]
  %s5 = inlined_call_operand.vmem [shape: f32[64,64], index: 5, kind: input, shape index: {}]
  %s6 = inlined_call_operand.vmem [shape: f32[64,1], index: 6, kind: input, shape index: {}]
  %s7 = inlined_call_operand.vmem [shape: f32[64,64], index: 7, kind: input, shape index: {}]
  %s8 = inlined_call_operand.vmem [shape: f32[64,1], index: 8, kind: input, shape index: {}]
  %s9 = inlined_call_operand.vmem [shape: f32[1,64], index: 9, kind: input, shape index: {}]
  %s10 = inlined_call_operand.<no memory space> [shape: f32[1,1], index: 10, kind: input, shape index: {}]
  %s11 = inlined_call_operand.hbm [shape: f32[1,128], index: 11, kind: output, shape index: {}]
  %s12 = sld [smem:[#allocation0]]
  $region54: #{tpu_custom_call.1} parent=0
    _
  %s14 = ssub.s32 1, %s12
  %s15 = scalar_select 0, %s14, %s12
  %v16 = vstv %s10
  %17 = vst [vmem:[#allocation2] sm:$0x1] %v16
  $region1: #{tpu_custom_call.1} parent=0
    #allocation3 [shape = 'u8[512]{0}', space=vmem, size = 0x400, scoped, tag = 'output window, operand 0, single buffered']
    #allocation4 [shape = 's32[1]{0}', space=sflag, size = 0x4, scoped, tag = 'scoped memory for tpu_custom_call.1']
    %18 = vsyncpa [#allocation4], 0
    // Predicated region
    $region2: #{tpu_custom_call.1} parent=1 // pred_check
      _
    $region3: #{tpu_custom_call.1} parent=1 // pred_check_branch
      %20 = sbr.rel (0) target = $region5
    $region4: #{tpu_custom_call.1} parent=1 // pred_region
      _
    $region5: #{tpu_custom_call.1} parent=1 // pred_fallthru
      _
    // Predicated region
    $region6: #{tpu_custom_call.1} parent=1 // pred_check
      _
    $region7: #{tpu_custom_call.1} parent=1 // pred_check_branch
      %22 = sbr.rel (0) target = $region9
    $region8: #{tpu_custom_call.1} parent=1 // pred_region
      _
    $region9: #{tpu_custom_call.1} parent=1 // pred_fallthru
      _
    // Predicated region
    $region10: #{tpu_custom_call.1} parent=1 // pred_check
      _
    $region11: #{tpu_custom_call.1} parent=1 // pred_check_branch
      %24 = sbr.rel (0) target = $region13
    $region12: #{tpu_custom_call.1} parent=1 // pred_region
      _
    $region13: #{tpu_custom_call.1} parent=1 // pred_fallthru
      _
    // Predicated region
    $region14: #{tpu_custom_call.1} parent=1 // pred_check
      _
    $region15: #{tpu_custom_call.1} parent=1 // pred_check_branch
      %26 = sbr.rel (0) target = $region17
    $region16: #{tpu_custom_call.1} parent=1 // pred_region
      _
    $region17: #{tpu_custom_call.1} parent=1 // pred_fallthru
      _
    // Predicated region
    $region18: #{tpu_custom_call.1} parent=1 // pred_check
      _
    $region19: #{tpu_custom_call.1} parent=1 // pred_check_branch
      %28 = sbr.rel (0) target = $region21
    $region20: #{tpu_custom_call.1} parent=1 // pred_region
      _
    $region21: #{tpu_custom_call.1} parent=1 // pred_fallthru
      _
    // Predicated region
    $region22: #{tpu_custom_call.1} parent=1 // pred_check
      _
    $region23: #{tpu_custom_call.1} parent=1 // pred_check_branch
      %30 = sbr.rel (0) target = $region25
    $region24: #{tpu_custom_call.1} parent=1 // pred_region
      _
    $region25: #{tpu_custom_call.1} parent=1 // pred_fallthru
      _
    // Predicated region
    $region26: #{tpu_custom_call.1} parent=1 // pred_check
      _
    $region27: #{tpu_custom_call.1} parent=1 // pred_check_branch
      %32 = sbr.rel (0) target = $region29
    $region28: #{tpu_custom_call.1} parent=1 // pred_region
      _
    $region29: #{tpu_custom_call.1} parent=1 // pred_fallthru
      _
    // Predicated region
    $region30: #{tpu_custom_call.1} parent=1 // pred_check
      _
    $region31: #{tpu_custom_call.1} parent=1 // pred_check_branch
      %34 = sbr.rel (0) target = $region33
    $region32: #{tpu_custom_call.1} parent=1 // pred_region
      _
    $region33: #{tpu_custom_call.1} parent=1 // pred_fallthru
      _
    // Predicated region
    $region34: #{tpu_custom_call.1} parent=1 // pred_check
      _
    $region35: #{tpu_custom_call.1} parent=1 // pred_check_branch
      %36 = sbr.rel (0) target = $region37
    $region36: #{tpu_custom_call.1} parent=1 // pred_region
      _
    $region37: #{tpu_custom_call.1} parent=1 // pred_fallthru
      _
    // Predicated region
    $region38: #{tpu_custom_call.1} parent=1 // pred_check
      _
    $region39: #{tpu_custom_call.1} parent=1 // pred_check_branch
      %38 = sbr.rel (0) target = $region41
    $region40: #{tpu_custom_call.1} parent=1 // pred_region
      _
    $region41: #{tpu_custom_call.1} parent=1 // pred_fallthru
      _
    // Predicated region
    $region42: #{tpu_custom_call.1} parent=1 // pred_check
      _
    $region43: #{tpu_custom_call.1} parent=1 // pred_check_branch
      %40 = sbr.rel (0) target = $region45
    $region44: #{tpu_custom_call.1} parent=1 // pred_region
      _
    $region45: #{tpu_custom_call.1} parent=1 // pred_fallthru
      _
    %v41 = vld [vmem:[%s0] sm:$0x1]
    %v42 = vld [vmem:[%s1] sm:$0xff]
    %v43 = vld [vmem:[%s1 + $0x8] sm:$0xff]
    %v44 = vld [vmem:[%s1 + $0x10] sm:$0xff]
    %v45 = vld [vmem:[%s1 + $0x18] sm:$0xff]
    %v46 = vld [vmem:[%s1 + $0x20] sm:$0xff]
    %v47 = vld [vmem:[%s1 + $0x28] sm:$0xff]
    %v48 = vld [vmem:[%s1 + $0x30] sm:$0xff]
    %v49 = vld [vmem:[%s1 + $0x38] sm:$0xff]
    %51 = vset.pattern.permute.xlu0 0
    %52 = vperm.xlu0 %51, %v42
    %v53 = vpop.permute.xlu0 %52
    %56 = vset.pattern.permute.xlu0 0
    %57 = vperm.xlu0 %56, %v43
    %v58 = vpop.permute.xlu0 %57
    %61 = vset.pattern.permute.xlu0 0
    %62 = vperm.xlu0 %61, %v44
    %v63 = vpop.permute.xlu0 %62
    %66 = vset.pattern.permute.xlu0 0
    %67 = vperm.xlu0 %66, %v45
    %v68 = vpop.permute.xlu0 %67
    %71 = vset.pattern.permute.xlu0 0
    %72 = vperm.xlu0 %71, %v46
    %v73 = vpop.permute.xlu0 %72
    %76 = vset.pattern.permute.xlu0 0
    %77 = vperm.xlu0 %76, %v47
    %v78 = vpop.permute.xlu0 %77
    %81 = vset.pattern.permute.xlu0 0
    %82 = vperm.xlu0 %81, %v48
    %v83 = vpop.permute.xlu0 %82
    %86 = vset.pattern.permute.xlu0 0
    %87 = vperm.xlu0 %86, %v49
    %v88 = vpop.permute.xlu0 %87
    %v91 = vperm.slane %v41, 0
    %v93 = vmul.f32 %v53, %v91
    %v94 = vmul.f32 %v58, %v91
    %v95 = vmul.f32 %v63, %v91
    %v96 = vmul.f32 %v68, %v91
    %v97 = vmul.f32 %v73, %v91
    %v98 = vmul.f32 %v78, %v91
    %v99 = vmul.f32 %v83, %v91
    %v100 = vmul.f32 %v88, %v91
    %v101 = vld [vmem:[%s2] sm:$0xff]
    %v102 = vld [vmem:[%s2 + $0x8] sm:$0xff]
    %v103 = vld [vmem:[%s2 + $0x10] sm:$0xff]
    %v104 = vld [vmem:[%s2 + $0x18] sm:$0xff]
    %v105 = vld [vmem:[%s2 + $0x20] sm:$0xff]
    %v106 = vld [vmem:[%s2 + $0x28] sm:$0xff]
    %v107 = vld [vmem:[%s2 + $0x30] sm:$0xff]
    %v108 = vld [vmem:[%s2 + $0x38] sm:$0xff]
    %110 = vset.pattern.permute.xlu0 0
    %111 = vperm.xlu0 %110, %v101
    %v112 = vpop.permute.xlu0 %111
    %115 = vset.pattern.permute.xlu0 0
    %116 = vperm.xlu0 %115, %v102
    %v117 = vpop.permute.xlu0 %116
    %120 = vset.pattern.permute.xlu0 0
    %121 = vperm.xlu0 %120, %v103
    %v122 = vpop.permute.xlu0 %121
    %125 = vset.pattern.permute.xlu0 0
    %126 = vperm.xlu0 %125, %v104
    %v127 = vpop.permute.xlu0 %126
    %130 = vset.pattern.permute.xlu0 0
    %131 = vperm.xlu0 %130, %v105
    %v132 = vpop.permute.xlu0 %131
    %135 = vset.pattern.permute.xlu0 0
    %136 = vperm.xlu0 %135, %v106
    %v137 = vpop.permute.xlu0 %136
    %140 = vset.pattern.permute.xlu0 0
    %141 = vperm.xlu0 %140, %v107
    %v142 = vpop.permute.xlu0 %141
    %145 = vset.pattern.permute.xlu0 0
    %146 = vperm.xlu0 %145, %v108
    %v147 = vpop.permute.xlu0 %146
    %v149 = vadd.f32 %v93, %v112
    %v150 = vadd.f32 %v94, %v117
    %v151 = vadd.f32 %v95, %v122
    %v152 = vadd.f32 %v96, %v127
    %v153 = vadd.f32 %v97, %v132
    %v154 = vadd.f32 %v98, %v137
    %v155 = vadd.f32 %v99, %v142
    %v156 = vadd.f32 %v100, %v147
    %v157 = vtanh.pop %v149
    %v158 = vtanh.pop %v150
    %v159 = vtanh.pop %v151
    %v160 = vtanh.pop %v152
    %v161 = vtanh.pop %v153
    %v162 = vtanh.pop %v154
    %v163 = vtanh.pop %v155
    %v164 = vtanh.pop %v156
    %v165 = vld [vmem:[%s3] sm:$0xff]
    %v166 = vld [vmem:[%s3 + $0x8] sm:$0xff]
    %v167 = vld [vmem:[%s3 + $0x10] sm:$0xff]
    %v168 = vld [vmem:[%s3 + $0x18] sm:$0xff]
    %v169 = vld [vmem:[%s3 + $0x20] sm:$0xff]
    %v170 = vld [vmem:[%s3 + $0x28] sm:$0xff]
    %v171 = vld [vmem:[%s3 + $0x30] sm:$0xff]
    %v172 = vld [vmem:[%s3 + $0x38] sm:$0xff]
    %v173 = vld [vmem:[%s4] sm:$0xff]
    %v174 = vld [vmem:[%s4 + $0x8] sm:$0xff]
    %v175 = vld [vmem:[%s4 + $0x10] sm:$0xff]
    %v176 = vld [vmem:[%s4 + $0x18] sm:$0xff]
    %v177 = vld [vmem:[%s4 + $0x20] sm:$0xff]
    %v178 = vld [vmem:[%s4 + $0x28] sm:$0xff]
    %v179 = vld [vmem:[%s4 + $0x30] sm:$0xff]
    %v180 = vld [vmem:[%s4 + $0x38] sm:$0xff]
    %182 = vset.pattern.permute.xlu0 0
    %183 = vperm.xlu0 %182, %v173
    %v184 = vpop.permute.xlu0 %183
    %187 = vset.pattern.permute.xlu0 0
    %188 = vperm.xlu0 %187, %v174
    %v189 = vpop.permute.xlu0 %188
    %192 = vset.pattern.permute.xlu0 0
    %193 = vperm.xlu0 %192, %v175
    %v194 = vpop.permute.xlu0 %193
    %197 = vset.pattern.permute.xlu0 0
    %198 = vperm.xlu0 %197, %v176
    %v199 = vpop.permute.xlu0 %198
    %202 = vset.pattern.permute.xlu0 0
    %203 = vperm.xlu0 %202, %v177
    %v204 = vpop.permute.xlu0 %203
    %207 = vset.pattern.permute.xlu0 0
    %208 = vperm.xlu0 %207, %v178
    %v209 = vpop.permute.xlu0 %208
    %212 = vset.pattern.permute.xlu0 0
    %213 = vperm.xlu0 %212, %v179
    %v214 = vpop.permute.xlu0 %213
    %217 = vset.pattern.permute.xlu0 0
    %218 = vperm.xlu0 %217, %v180
    %v219 = vpop.permute.xlu0 %218
    %vm221 = vcmask 523264
    %v223 = vsel %vm221, %v165, 0
    %v226 = vsel %vm221, %v166, 0
    %v229 = vsel %vm221, %v167, 0
    %v232 = vsel %vm221, %v168, 0
    %v235 = vsel %vm221, %v169, 0
    %v238 = vsel %vm221, %v170, 0
    %v241 = vsel %vm221, %v171, 0
    %v244 = vsel %vm221, %v172, 0
    %246 = vmatpush.msra.mxu0 0.0
    %247 = vmatpush.msra.mxu0 0.0
    %248 = vmatpush.msra.mxu0 0.0
    %249 = vmatpush.msra.mxu0 0.0
    %250 = vmatpush.msra.mxu0 0.0
    %251 = vmatpush.msra.mxu0 0.0
    %252 = vmatpush.msra.mxu0 0.0
    %253 = vmatpush.msra.mxu0 0.0
    %254 = vmatpush.msra.mxu0 %v164
    %255 = vmatpush.msra.mxu0 %v163
    %256 = vmatpush.msra.mxu0 %v162
    %257 = vmatpush.msra.mxu0 %v161
    %258 = vmatpush.msra.mxu0 %v160
    %259 = vmatpush.msra.mxu0 %v159
    %260 = vmatpush.msra.mxu0 %v158
    %261 = vmatpush.msra.mxu0 %v157
    %262 = vmatmul.f32.gmra.mxu0 %v223
    %v263 = vpop.f32.mrf.mxu0
    %v264 = vadd.f32 %v184, %v263
    %265 = vmatmul.f32.gmra.mxu0 %v226
    %v266 = vpop.f32.mrf.mxu0
    %v267 = vadd.f32 %v189, %v266
    %268 = vmatmul.f32.gmra.mxu0 %v229
    %v269 = vpop.f32.mrf.mxu0
    %v270 = vadd.f32 %v194, %v269
    %271 = vmatmul.f32.gmra.mxu0 %v232
    %v272 = vpop.f32.mrf.mxu0
    %v273 = vadd.f32 %v199, %v272
    %274 = vmatmul.f32.gmra.mxu0 %v235
    %v275 = vpop.f32.mrf.mxu0
    %v276 = vadd.f32 %v204, %v275
    %277 = vmatmul.f32.gmra.mxu0 %v238
    %v278 = vpop.f32.mrf.mxu0
    %v279 = vadd.f32 %v209, %v278
    %280 = vmatmul.f32.gmra.mxu0 %v241
    %v281 = vpop.f32.mrf.mxu0
    %v282 = vadd.f32 %v214, %v281
    %283 = vmatmul.f32.gmra.mxu0 %v244
    %v284 = vpop.f32.mrf.mxu0
    %v285 = vadd.f32 %v219, %v284
    %286 = vdwg.mxu0
    %v287 = vtanh.pop %v264
    %v288 = vtanh.pop %v267
    %v289 = vtanh.pop %v270
    %v290 = vtanh.pop %v273
    %v291 = vtanh.pop %v276
    %v292 = vtanh.pop %v279
    %v293 = vtanh.pop %v282
    %v294 = vtanh.pop %v285
    %v295 = vld [vmem:[%s5] sm:$0xff]
    %v296 = vld [vmem:[%s5 + $0x8] sm:$0xff]
    %v297 = vld [vmem:[%s5 + $0x10] sm:$0xff]
    %v298 = vld [vmem:[%s5 + $0x18] sm:$0xff]
    %v299 = vld [vmem:[%s5 + $0x20] sm:$0xff]
    %v300 = vld [vmem:[%s5 + $0x28] sm:$0xff]
    %v301 = vld [vmem:[%s5 + $0x30] sm:$0xff]
    %v302 = vld [vmem:[%s5 + $0x38] sm:$0xff]
    %v303 = vld [vmem:[%s6] sm:$0xff]
    %v304 = vld [vmem:[%s6 + $0x8] sm:$0xff]
    %v305 = vld [vmem:[%s6 + $0x10] sm:$0xff]
    %v306 = vld [vmem:[%s6 + $0x18] sm:$0xff]
    %v307 = vld [vmem:[%s6 + $0x20] sm:$0xff]
    %v308 = vld [vmem:[%s6 + $0x28] sm:$0xff]
    %v309 = vld [vmem:[%s6 + $0x30] sm:$0xff]
    %v310 = vld [vmem:[%s6 + $0x38] sm:$0xff]
    %312 = vset.pattern.permute.xlu0 0
    %313 = vperm.xlu0 %312, %v303
    %v314 = vpop.permute.xlu0 %313
    %317 = vset.pattern.permute.xlu0 0
    %318 = vperm.xlu0 %317, %v304
    %v319 = vpop.permute.xlu0 %318
    %322 = vset.pattern.permute.xlu0 0
    %323 = vperm.xlu0 %322, %v305
    %v324 = vpop.permute.xlu0 %323
    %327 = vset.pattern.permute.xlu0 0
    %328 = vperm.xlu0 %327, %v306
    %v329 = vpop.permute.xlu0 %328
    %332 = vset.pattern.permute.xlu0 0
    %333 = vperm.xlu0 %332, %v307
    %v334 = vpop.permute.xlu0 %333
    %337 = vset.pattern.permute.xlu0 0
    %338 = vperm.xlu0 %337, %v308
    %v339 = vpop.permute.xlu0 %338
    %342 = vset.pattern.permute.xlu0 0
    %343 = vperm.xlu0 %342, %v309
    %v344 = vpop.permute.xlu0 %343
    %347 = vset.pattern.permute.xlu0 0
    %348 = vperm.xlu0 %347, %v310
    %v349 = vpop.permute.xlu0 %348
    %v352 = vsel %vm221, %v295, 0
    %v355 = vsel %vm221, %v296, 0
    %v358 = vsel %vm221, %v297, 0
    %v361 = vsel %vm221, %v298, 0
    %v364 = vsel %vm221, %v299, 0
    %v367 = vsel %vm221, %v300, 0
    %v370 = vsel %vm221, %v301, 0
    %v373 = vsel %vm221, %v302, 0
    %375 = vmatpush.msra.mxu0 0.0
    %376 = vmatpush.msra.mxu0 0.0
    %377 = vmatpush.msra.mxu0 0.0
    %378 = vmatpush.msra.mxu0 0.0
    %379 = vmatpush.msra.mxu0 0.0
    %380 = vmatpush.msra.mxu0 0.0
    %381 = vmatpush.msra.mxu0 0.0
    %382 = vmatpush.msra.mxu0 0.0
    %383 = vmatpush.msra.mxu0 %v294
    %384 = vmatpush.msra.mxu0 %v293
    %385 = vmatpush.msra.mxu0 %v292
    %386 = vmatpush.msra.mxu0 %v291
    %387 = vmatpush.msra.mxu0 %v290
    %388 = vmatpush.msra.mxu0 %v289
    %389 = vmatpush.msra.mxu0 %v288
    %390 = vmatpush.msra.mxu0 %v287
    %391 = vmatmul.f32.gmra.mxu0 %v352
    %v392 = vpop.f32.mrf.mxu0
    %v393 = vadd.f32 %v314, %v392
    %394 = vmatmul.f32.gmra.mxu0 %v355
    %v395 = vpop.f32.mrf.mxu0
    %v396 = vadd.f32 %v319, %v395
    %397 = vmatmul.f32.gmra.mxu0 %v358
    %v398 = vpop.f32.mrf.mxu0
    %v399 = vadd.f32 %v324, %v398
    %400 = vmatmul.f32.gmra.mxu0 %v361
    %v401 = vpop.f32.mrf.mxu0
    %v402 = vadd.f32 %v329, %v401
    %403 = vmatmul.f32.gmra.mxu0 %v364
    %v404 = vpop.f32.mrf.mxu0
    %v405 = vadd.f32 %v334, %v404
    %406 = vmatmul.f32.gmra.mxu0 %v367
    %v407 = vpop.f32.mrf.mxu0
    %v408 = vadd.f32 %v339, %v407
    %409 = vmatmul.f32.gmra.mxu0 %v370
    %v410 = vpop.f32.mrf.mxu0
    %v411 = vadd.f32 %v344, %v410
    %412 = vmatmul.f32.gmra.mxu0 %v373
    %v413 = vpop.f32.mrf.mxu0
    %v414 = vadd.f32 %v349, %v413
    %415 = vdwg.mxu0
    %v416 = vtanh.pop %v393
    %v417 = vtanh.pop %v396
    %v418 = vtanh.pop %v399
    %v419 = vtanh.pop %v402
    %v420 = vtanh.pop %v405
    %v421 = vtanh.pop %v408
    %v422 = vtanh.pop %v411
    %v423 = vtanh.pop %v414
    %v424 = vld [vmem:[%s7] sm:$0xff]
    %v425 = vld [vmem:[%s7 + $0x8] sm:$0xff]
    %v426 = vld [vmem:[%s7 + $0x10] sm:$0xff]
    %v427 = vld [vmem:[%s7 + $0x18] sm:$0xff]
    %v428 = vld [vmem:[%s7 + $0x20] sm:$0xff]
    %v429 = vld [vmem:[%s7 + $0x28] sm:$0xff]
    %v430 = vld [vmem:[%s7 + $0x30] sm:$0xff]
    %v431 = vld [vmem:[%s7 + $0x38] sm:$0xff]
    %v432 = vld [vmem:[%s8] sm:$0xff]
    %v433 = vld [vmem:[%s8 + $0x8] sm:$0xff]
    %v434 = vld [vmem:[%s8 + $0x10] sm:$0xff]
    %v435 = vld [vmem:[%s8 + $0x18] sm:$0xff]
    %v436 = vld [vmem:[%s8 + $0x20] sm:$0xff]
    %v437 = vld [vmem:[%s8 + $0x28] sm:$0xff]
    %v438 = vld [vmem:[%s8 + $0x30] sm:$0xff]
    %v439 = vld [vmem:[%s8 + $0x38] sm:$0xff]
    %441 = vset.pattern.permute.xlu0 0
    %442 = vperm.xlu0 %441, %v432
    %v443 = vpop.permute.xlu0 %442
    %446 = vset.pattern.permute.xlu0 0
    %447 = vperm.xlu0 %446, %v433
    %v448 = vpop.permute.xlu0 %447
    %451 = vset.pattern.permute.xlu0 0
    %452 = vperm.xlu0 %451, %v434
    %v453 = vpop.permute.xlu0 %452
    %456 = vset.pattern.permute.xlu0 0
    %457 = vperm.xlu0 %456, %v435
    %v458 = vpop.permute.xlu0 %457
    %461 = vset.pattern.permute.xlu0 0
    %462 = vperm.xlu0 %461, %v436
    %v463 = vpop.permute.xlu0 %462
    %466 = vset.pattern.permute.xlu0 0
    %467 = vperm.xlu0 %466, %v437
    %v468 = vpop.permute.xlu0 %467
    %471 = vset.pattern.permute.xlu0 0
    %472 = vperm.xlu0 %471, %v438
    %v473 = vpop.permute.xlu0 %472
    %476 = vset.pattern.permute.xlu0 0
    %477 = vperm.xlu0 %476, %v439
    %v478 = vpop.permute.xlu0 %477
    %v481 = vsel %vm221, %v424, 0
    %v484 = vsel %vm221, %v425, 0
    %v487 = vsel %vm221, %v426, 0
    %v490 = vsel %vm221, %v427, 0
    %v493 = vsel %vm221, %v428, 0
    %v496 = vsel %vm221, %v429, 0
    %v499 = vsel %vm221, %v430, 0
    %v502 = vsel %vm221, %v431, 0
    %504 = vmatpush.msra.mxu0 0.0
    %505 = vmatpush.msra.mxu0 0.0
    %506 = vmatpush.msra.mxu0 0.0
    %507 = vmatpush.msra.mxu0 0.0
    %508 = vmatpush.msra.mxu0 0.0
    %509 = vmatpush.msra.mxu0 0.0
    %510 = vmatpush.msra.mxu0 0.0
    %511 = vmatpush.msra.mxu0 0.0
    %512 = vmatpush.msra.mxu0 %v423
    %513 = vmatpush.msra.mxu0 %v422
    %514 = vmatpush.msra.mxu0 %v421
    %515 = vmatpush.msra.mxu0 %v420
    %516 = vmatpush.msra.mxu0 %v419
    %517 = vmatpush.msra.mxu0 %v418
    %518 = vmatpush.msra.mxu0 %v417
    %519 = vmatpush.msra.mxu0 %v416
    %520 = vmatmul.f32.gmra.mxu0 %v481
    %v521 = vpop.f32.mrf.mxu0
    %v522 = vadd.f32 %v443, %v521
    %523 = vmatmul.f32.gmra.mxu0 %v484
    %v524 = vpop.f32.mrf.mxu0
    %v525 = vadd.f32 %v448, %v524
    %526 = vmatmul.f32.gmra.mxu0 %v487
    %v527 = vpop.f32.mrf.mxu0
    %v528 = vadd.f32 %v453, %v527
    %529 = vmatmul.f32.gmra.mxu0 %v490
    %v530 = vpop.f32.mrf.mxu0
    %v531 = vadd.f32 %v458, %v530
    %532 = vmatmul.f32.gmra.mxu0 %v493
    %v533 = vpop.f32.mrf.mxu0
    %v534 = vadd.f32 %v463, %v533
    %535 = vmatmul.f32.gmra.mxu0 %v496
    %v536 = vpop.f32.mrf.mxu0
    %v537 = vadd.f32 %v468, %v536
    %538 = vmatmul.f32.gmra.mxu0 %v499
    %v539 = vpop.f32.mrf.mxu0
    %v540 = vadd.f32 %v473, %v539
    %541 = vmatmul.f32.gmra.mxu0 %v502
    %v542 = vpop.f32.mrf.mxu0
    %v543 = vadd.f32 %v478, %v542
    %544 = vdwg.mxu0
    %v545 = vtanh.pop %v522
    %v546 = vtanh.pop %v525
    %v547 = vtanh.pop %v528
    %v548 = vtanh.pop %v531
    %v549 = vtanh.pop %v534
    %v550 = vtanh.pop %v537
    %v551 = vtanh.pop %v540
    %v552 = vtanh.pop %v543
    %v553 = vld [vmem:[%s9] sm:$0x1]
    %v554 = vld [vmem:[#allocation2] sm:$0x1]
    %556 = vset.pattern.permute.xlu0 0
    %557 = vperm.xlu0 %556, %v554
    %v558 = vpop.permute.xlu0 %557
    %v560 = vperm.slane %v558, 0
    %v562 = vsel %vm221, %v553, 0
    %564 = vmatpush.msra.mxu0 0.0
    %565 = vmatpush.msra.mxu0 0.0
    %566 = vmatpush.msra.mxu0 0.0
    %567 = vmatpush.msra.mxu0 0.0
    %568 = vmatpush.msra.mxu0 0.0
    %569 = vmatpush.msra.mxu0 0.0
    %570 = vmatpush.msra.mxu0 0.0
    %571 = vmatpush.msra.mxu0 0.0
    %572 = vmatpush.msra.mxu0 %v552
    %573 = vmatpush.msra.mxu0 %v551
    %574 = vmatpush.msra.mxu0 %v550
    %575 = vmatpush.msra.mxu0 %v549
    %576 = vmatpush.msra.mxu0 %v548
    %577 = vmatpush.msra.mxu0 %v547
    %578 = vmatpush.msra.mxu0 %v546
    %579 = vmatpush.msra.mxu0 %v545
    %580 = vmatmul.f32.gmra.mxu0 %v562
    %v581 = vpop.f32.mrf.mxu0
    %v582 = vadd.f32 %v560, %v581
    %583 = vdwg.mxu0
    %584 = vst [vmem:[#allocation3] sm:$0x1] %v582
    // Predicated region
    $region46: #{tpu_custom_call.1} parent=1 // pred_check
      _
    $region47: #{tpu_custom_call.1} parent=1 // pred_check_branch
      %586 = sbr.rel (0) target = $region49
    $region48: #{tpu_custom_call.1} parent=1 // pred_region
      %588 = vsyncadd [#allocation4], 0
      %s590 = sshll.u32 [#allocation3], 4
      %s591 = int_to_ptr.vmem [resolvable:$true] %s590
      %s592 = sshll.u32 %s11, 4
      %s593 = int_to_ptr.hbm [resolvable:$true] %s592
      %595 = dma.vmem_to_hbm [thread:$0]  %s591, 16, %s593, [#allocation4]
    $region49: #{tpu_custom_call.1} parent=1 // pred_fallthru
      _
    // Predicated region
    $region50: #{tpu_custom_call.1} parent=1 // pred_check
      _
    $region51: #{tpu_custom_call.1} parent=1 // pred_check_branch
      %597 = sbr.rel (0) target = $region53
    $region52: #{tpu_custom_call.1} parent=1 // pred_region
      %599 = dma.done [#allocation4], 16
    $region53: #{tpu_custom_call.1} parent=1 // pred_fallthru
      _
    %600 = vsyncpa [#allocation4], 1

</llo_original>
